<compile_context>
chip_gen: v6e
topology: v6e:2x2x1
jax: 0.10.0
libtpu: 0.0.40
codegen_flags: <defaults>
</compile_context>

<pallas_src>
import math
from collections import namedtuple

import jax
import jax.numpy as jnp
from jax.experimental import pallas as pl
from jax.experimental.pallas import tpu as pltpu


def _round_up(x, m):
    return ((x + m - 1) // m) * m


_HwProfile = namedtuple("_HwProfile", ["tm_target", "tn_target", "tk_target", "vmem_cap"])


def _hw_profile():
    """Per-generation tile targets / scoped-VMEM caps, keyed off VMEM capacity."""
    vmem_bytes = 64 << 20                       # conservative default: v7x per-TC VMEM
    try:
        info = pltpu.get_tpu_info()
        vmem_bytes = int(getattr(info, "vmem_capacity_bytes", vmem_bytes))
    except Exception:
        pass
    if vmem_bytes >= (100 << 20):
        # v5e / v6e (128 MiB VMEM).  (On v5e specifically tn could be trimmed to
        # 256 since its MXU is 128-wide, but 512 is correct and MXU-aligned.)
        return _HwProfile(tm_target=512, tn_target=512, tk_target=2048, vmem_cap=96 << 20)
    # v7x: 64 MiB VMEM, 2 TensorCores -> modest tiles, tight scoped budget.
    return _HwProfile(tm_target=256, tn_target=512, tk_target=2048, vmem_cap=40 << 20)


def _pick_tile(dim, unit, target):
    """Tile size (multiple of `unit`) minimizing padding waste, capped near `target`.

    If the unit-rounded dim fits under `target`, the whole (padded) dim is one
    tile; otherwise prefer least padding, largest tile on ties
    (e.g. K=640, unit=128, target=2048 -> 640; K=8192 -> 2048).
    """
    base = _round_up(max(int(dim), 1), unit)
    if base <= target:
        return base
    best_t, best_key = unit, None
    t = unit
    while t <= target:
        waste = _round_up(base, t) - base
        key = (waste, -t)
        if best_key is None or key < best_key:
            best_key, best_t = key, t
        t += unit
    return best_t


def _linear_kernel(x_ref, w_ref, b_ref, o_ref):
    """One (tm, tn) output tile; accumulates directly into the f32 output block
    (resident across the K grid axis) and adds bias on the last K step."""
    k = pl.program_id(2)

    @pl.when(k == 0)
    def _():
        o_ref[...] = jnp.zeros_like(o_ref)

    # x tile [tm, tk] (bf16) x W tile [tk, tn] (bf16, pre-transposed at init)
    # -> f32 accumulation on the MXU; no per-tile transpose needed.
    o_ref[...] += jnp.dot(x_ref[...], w_ref[...],
                          preferred_element_type=jnp.float32)

    @pl.when(k == pl.num_programs(2) - 1)
    def _():
        o_ref[...] = o_ref[...] + b_ref[...]


class ModelLR:
    """Pallas equivalent of the PyTorch `model_lr` module (a single nn.Linear)."""

    def __init__(self, weight, bias, *, compute_dtype=jnp.bfloat16):
        weight = jnp.asarray(weight, jnp.float32)   # PyTorch layout: [out, in]
        bias = jnp.asarray(bias, jnp.float32)
        self.out_dim, self.in_dim = weight.shape
        assert bias.shape == (self.out_dim,)

        self._compute_dtype = jnp.dtype(compute_dtype)
        self._dsize = self._compute_dtype.itemsize
        # bf16 packs 2 rows per sublane -> second-minor tiles want multiples of 16.
        self._m_unit = 16 if self._dsize == 2 else 8

        self._prof = _hw_profile()
        self._tn = _pick_tile(self.out_dim, 128, self._prof.tn_target)
        self._tk = _pick_tile(self.in_dim, 128, self._prof.tk_target)

        n_pad = _round_up(_round_up(self.out_dim, 128), self._tn)
        k_pad = _round_up(_round_up(self.in_dim, 128), self._tk)

        # Pack W once (static parameter): pad -> transpose to [K_pad, N_pad] ->
        # cast to bf16.  Bias stays f32 (added into the f32 accumulator).
        w_p = jnp.pad(weight, ((0, n_pad - self.out_dim), (0, k_pad - self.in_dim)))
        self._w_packed = jnp.asarray(w_p.T, self._compute_dtype)
        self._b_packed = jnp.pad(bias, (0, n_pad - self.out_dim)).reshape(1, n_pad)

        self._jit_forward = jax.jit(self._forward_impl)

    def __call__(self, x):
        return self._jit_forward(x, self._w_packed, self._b_packed)

    def _forward_impl(self, x, w_packed, b_packed):
        B, K = x.shape
        assert K == self.in_dim, "input feature dim mismatch"
        K_pad, N_pad = w_packed.shape
        tn, tk = self._tn, self._tk

        tm = _pick_tile(B, self._m_unit, self._prof.tm_target)
        M_pad = _round_up(_round_up(B, self._m_unit), tm)
        # v7x has 2 TensorCores: make sure the "parallel" (i, j) grid has >= 2
        # blocks when the shape allows it, so the second core isn't idle.
        if (M_pad // tm) * (N_pad // tn) < 2 and tm % (2 * self._m_unit) == 0:
            tm //= 2

        # Only x (activations) is padded/cast per call; W/bias were packed at init.
        x_p = jnp.pad(x.astype(self._compute_dtype),
                      ((0, M_pad - B), (0, K_pad - K)))

        grid = (M_pad // tm, N_pad // tn, K_pad // tk)
        grid_m, grid_n, _ = grid

        # Scoped VMEM: double-buffered bf16 x/W tiles + f32 bias row + the
        # resident f32 output tile (x2 for its buffering), with 2x headroom.
        vmem_need = (2 * (tm * tk * self._dsize + tk * tn * self._dsize + tn * 4)
                     + 2 * tm * tn * 4)
        vmem_limit = int(min(self._prof.vmem_cap, max(2 * vmem_need, 32 << 20)))

        cost = pl.CostEstimate(
            flops=2 * M_pad * N_pad * K_pad,
            transcendentals=0,
            # Re-streaming accounted for: x re-read per N tile, W per M tile.
            bytes_accessed=(M_pad * K_pad * self._dsize * grid_n
                            + K_pad * N_pad * self._dsize * grid_m
                            + M_pad * N_pad * 4
                            + N_pad * 4 * grid_m),
        )

        out_p = pl.pallas_call(
            _linear_kernel,
            out_shape=jax.ShapeDtypeStruct((M_pad, N_pad), jnp.float32),
            grid_spec=pltpu.PrefetchScalarGridSpec(
                num_scalar_prefetch=0,
                grid=grid,
                in_specs=[
                    pl.BlockSpec((tm, tk), lambda i, j, k: (i, k)),   # x tile
                    pl.BlockSpec((tk, tn), lambda i, j, k: (k, j)),   # W tile ([K, N])
                    pl.BlockSpec((1, tn), lambda i, j, k: (0, j)),    # bias row
                ],
                out_specs=pl.BlockSpec((tm, tn), lambda i, j, k: (i, j)),
            ),
            compiler_params=pltpu.CompilerParams(
                dimension_semantics=("parallel", "parallel", "arbitrary"),
                vmem_limit_bytes=vmem_limit,
            ),
            cost_estimate=cost,
        )(x_p, w_packed, b_packed)

        return out_p[:B, :self.out_dim]


if __name__ == "__main__":
    key = jax.random.PRNGKey(0)
    k_x, k_w, k_b = jax.random.split(key, 3)

    batch, input_dim, output_dim = 8, 2, 1   # model_lr defaults
    x = jax.random.normal(k_x, (batch, input_dim), jnp.float32)

    # torch.nn.Linear-style init: U(-1/sqrt(in), 1/sqrt(in)).
    bound = 1.0 / math.sqrt(input_dim)
    weight = jax.random.uniform(k_w, (output_dim, input_dim), jnp.float32, -bound, bound)
    bias = jax.random.uniform(k_b, (output_dim,), jnp.float32, -bound, bound)

    model = ModelLR(weight, bias)
    out = model(x)
    jax.block_until_ready(out)

    # Plain-JAX reference (same math as nn.Linear, f32).
    ref = x @ weight.T + bias
    assert out.shape == (batch, output_dim)
    # bf16 inputs with f32 accumulation -> loosened tolerance vs the f32 reference.
    assert jnp.allclose(out, ref, atol=5e-2, rtol=5e-2), (out, ref)

    print("KERNEL_OK")
</pallas_src>

<mosaic_0001>
module attributes {stable_mosaic.version = 11 : i64} {
  func.func @_linear_kernel(%arg0: i32, %arg1: i32, %arg2: i32, %arg3: memref<16x128xbf16, #tpu.memory_space<vmem>>, %arg4: memref<128x128xbf16, #tpu.memory_space<vmem>>, %arg5: memref<1x128xf32, #tpu.memory_space<vmem>>, %arg6: memref<16x128xf32, #tpu.memory_space<vmem>>) attributes {dimension_semantics = [#tpu.dimension_semantics<parallel>, #tpu.dimension_semantics<parallel>, #tpu.dimension_semantics<arbitrary>], iteration_bounds = array<i64: 1, 1, 1>, scalar_prefetch = 0 : i64, scratch_operands = 0 : i64, tpu.core_type = #tpu.core_type<tc>, window_params = [{transform_indices = @transform_0, window_bounds = array<i64: 16, 128>}, {transform_indices = @transform_1, window_bounds = array<i64: 128, 128>}, {transform_indices = @transform_2, window_bounds = array<i64: 1, 128>}, {transform_indices = @transform_3, window_bounds = array<i64: 16, 128>}]} {
    %c0_i32 = arith.constant 0 : i32
    %0 = arith.cmpi eq, %arg2, %c0_i32 : i32
    %1 = arith.extui %0 : i1 to i32
    %c0_i32_0 = arith.constant 0 : i32
    %2 = arith.cmpi ne, %1, %c0_i32_0 : i32
    scf.if %2 {
      %cst_10 = arith.constant 0.000000e+00 : f32
      %12 = vector.broadcast %cst_10 : f32 to vector<16x128xf32>
      %c0_11 = arith.constant 0 : index
      %c0_12 = arith.constant 0 : index
      %13 = vector.load %arg6[%c0_11, %c0_12] : memref<16x128xf32, #tpu.memory_space<vmem>>, vector<16x128xf32>
      tpu.vector_store %arg6[%c0_11, %c0_12], %12 {strides = array<i32>} : memref<16x128xf32, #tpu.memory_space<vmem>>, vector<16x128xf32>,
    } else {
    }
    %c0 = arith.constant 0 : index
    %c0_1 = arith.constant 0 : index
    %3 = vector.load %arg6[%c0, %c0_1] : memref<16x128xf32, #tpu.memory_space<vmem>>, vector<16x128xf32>
    %c0_2 = arith.constant 0 : index
    %c0_3 = arith.constant 0 : index
    %4 = vector.load %arg3[%c0_2, %c0_3] : memref<16x128xbf16, #tpu.memory_space<vmem>>, vector<16x128xbf16>
    %c0_4 = arith.constant 0 : index
    %c0_5 = arith.constant 0 : index
    %5 = vector.load %arg4[%c0_4, %c0_5] : memref<128x128xbf16, #tpu.memory_space<vmem>>, vector<128x128xbf16>
    %cst = arith.constant dense<0.000000e+00> : vector<16x128xf32>
    %6 = tpu.matmul %4, %5, %cst {dimension_numbers = #tpu.dot_dimension_numbers<[1], [0], [0], [1], [0, 0, 1, 1], [], []>} : vector<16x128xbf16>, vector<128x128xbf16>, vector<16x128xf32> -> vector<16x128xf32>
    %7 = arith.addf %3, %6 : vector<16x128xf32>
    %c0_6 = arith.constant 0 : index
    %c0_7 = arith.constant 0 : index
    %8 = vector.load %arg6[%c0_6, %c0_7] : memref<16x128xf32, #tpu.memory_space<vmem>>, vector<16x128xf32>
    tpu.vector_store %arg6[%c0_6, %c0_7], %7 {strides = array<i32>} : memref<16x128xf32, #tpu.memory_space<vmem>>, vector<16x128xf32>,
    %c0_i32_8 = arith.constant 0 : i32
    %9 = arith.cmpi eq, %arg2, %c0_i32_8 : i32
    %10 = arith.extui %9 : i1 to i32
    %c0_i32_9 = arith.constant 0 : i32
    %11 = arith.cmpi ne, %10, %c0_i32_9 : i32
    scf.if %11 {
      %c0_10 = arith.constant 0 : index
      %c0_11 = arith.constant 0 : index
      %12 = vector.load %arg6[%c0_10, %c0_11] : memref<16x128xf32, #tpu.memory_space<vmem>>, vector<16x128xf32>
      %c0_12 = arith.constant 0 : index
      %c0_13 = arith.constant 0 : index
      %13 = vector.load %arg5[%c0_12, %c0_13] : memref<1x128xf32, #tpu.memory_space<vmem>>, vector<1x128xf32>
      %14 = vector.broadcast %13 : vector<1x128xf32> to vector<16x128xf32>
      %15 = arith.addf %12, %14 : vector<16x128xf32>
      %c0_14 = arith.constant 0 : index
      %c0_15 = arith.constant 0 : index
      %16 = vector.load %arg6[%c0_14, %c0_15] : memref<16x128xf32, #tpu.memory_space<vmem>>, vector<16x128xf32>
      tpu.vector_store %arg6[%c0_14, %c0_15], %15 {strides = array<i32>} : memref<16x128xf32, #tpu.memory_space<vmem>>, vector<16x128xf32>,
    } else {
    }
    return
  }
  func.func @transform_0(%arg0: i32, %arg1: i32, %arg2: i32) -> (i32, i32) {
    %c0_i32 = arith.constant 0 : i32
    return %arg0, %arg2 : i32, i32
  }
  func.func @transform_1(%arg0: i32, %arg1: i32, %arg2: i32) -> (i32, i32) {
    %c0_i32 = arith.constant 0 : i32
    return %arg2, %arg1 : i32, i32
  }
  func.func @transform_2(%arg0: i32, %arg1: i32, %arg2: i32) -> (i32, i32) {
    %c0_i32 = arith.constant 0 : i32
    %c0_i32_0 = arith.constant 0 : i32
    return %c0_i32, %arg1 : i32, i32
  }
  func.func @transform_3(%arg0: i32, %arg1: i32, %arg2: i32) -> (i32, i32) {
    %c0_i32 = arith.constant 0 : i32
    return %arg0, %arg1 : i32, i32
  }
}

</mosaic_0001>

<llo_original>
// kernel: _forward_impl.1
$region0: #{_forward_impl.1}
  #allocation0 [shape = 'u32[]', space=smem, size = 0x4, offset = 0x4, fixed_abs, tag = 'smem constant byte address 0x4 - core index']
  #allocation1 [shape = 'u32[144,128]{1,0:T(1,128)}', space=vmem, size = 0x12000, scoped, tag = 'internal scratch']
  %s0 = inlined_call_operand.vmem [shape: bf16[16,128], index: 0, kind: input, shape index: {}]
  %s1 = inlined_call_operand.hbm [shape: bf16[128,128], index: 1, kind: input, shape index: {}]
  %s2 = inlined_call_operand.vmem [shape: f32[1,128], index: 2, kind: input, shape index: {}]
  %s3 = inlined_call_operand.vmem [shape: f32[16,128], index: 3, kind: output, shape index: {}]
  %s4 = sld [smem:[#allocation0]]
  $region34: #{_forward_impl.1} parent=0
    _
  %s6 = ssub.s32 1, %s4
  %s7 = scalar_select 0, %s6, %s4
  $region1: #{_forward_impl.1} parent=0
    #allocation2 [shape = 'u8[32768]{0}', space=vmem, size = 0x8000, scoped, tag = 'input window, operand 1, single buffered']
    #allocation3 [shape = 's32[1]{0}', space=sflag, size = 0x4, scoped, tag = 'scoped memory for _forward_impl.1']
    %8 = vsyncpa [#allocation3], 0
    // Predicated region
    $region2: #{_forward_impl.1} parent=1 // pred_check
      _
    $region3: #{_forward_impl.1} parent=1 // pred_check_branch
      %10 = sbr.rel (0) target = $region5
    $region4: #{_forward_impl.1} parent=1 // pred_region
      _
    $region5: #{_forward_impl.1} parent=1 // pred_fallthru
      _
    // Predicated region
    $region6: #{_forward_impl.1} parent=1 // pred_check
      _
    $region7: #{_forward_impl.1} parent=1 // pred_check_branch
      %12 = sbr.rel (0) target = $region9
    $region8: #{_forward_impl.1} parent=1 // pred_region
      %s14 = ssub.s32 1024, 1024
      %15 = vsyncadd [#allocation3], %s14
      %s16 = sshll.u32 [#allocation2], 4
      %s17 = int_to_ptr.vmem [resolvable:$true] %s16
      %22 = dma.hbm_to_vmem [thread:$0]  %s1, 1024, %s17, [#allocation3], 64, 64, 4
    $region9: #{_forward_impl.1} parent=1 // pred_fallthru
      _
    // Predicated region
    $region10: #{_forward_impl.1} parent=1 // pred_check
      _
    $region11: #{_forward_impl.1} parent=1 // pred_check_branch
      %24 = sbr.rel (0) target = $region13
    $region12: #{_forward_impl.1} parent=1 // pred_region
      _
    $region13: #{_forward_impl.1} parent=1 // pred_fallthru
      _
    // Predicated region
    $region14: #{_forward_impl.1} parent=1 // pred_check
      _
    $region15: #{_forward_impl.1} parent=1 // pred_check_branch
      %26 = sbr.rel (0) target = $region17
    $region16: #{_forward_impl.1} parent=1 // pred_region
      %27 = dma.done [#allocation3], 1024
    $region17: #{_forward_impl.1} parent=1 // pred_fallthru
      _
    %p29 = scmp.eq.s32.totalorder 0, 0
    // Predicated region
    $region18: #{_forward_impl.1} parent=1 // pred_check
      %p30 = pneg %p29
    $region19: #{_forward_impl.1} parent=1 // pred_check_branch
      %32 = sbr.rel (%p30) target = $region21
    $region20: #{_forward_impl.1} parent=1 // pred_region
      %33 = vst [vmem:[%s3] sm:$0xff] 0.0
      %34 = vst [vmem:[%s3 + $0x8] sm:$0xff] 0.0
    $region21: #{_forward_impl.1} parent=1 // pred_fallthru
      _
    %v35 = vld [vmem:[%s3] sm:$0xff]
    %v36 = vld [vmem:[%s3 + $0x8] sm:$0xff]
    %v37 = vld [vmem:[%s0] sm:$0xf]
    %v38 = vld [vmem:[%s0 + $0x4] sm:$0xf]
    %v39 = vld [vmem:[#allocation2] sm:$0xf]
    %v40 = vld [vmem:[#allocation2 + $0x4] sm:$0xf]
    %v41 = vld [vmem:[#allocation2 + $0x8] sm:$0xf]
    %v42 = vld [vmem:[#allocation2 + $0xc] sm:$0xf]
    %v43 = vld [vmem:[#allocation2 + $0x10] sm:$0xf]
    %v44 = vld [vmem:[#allocation2 + $0x14] sm:$0xf]
    %v45 = vld [vmem:[#allocation2 + $0x18] sm:$0xf]
    %v46 = vld [vmem:[#allocation2 + $0x1c] sm:$0xf]
    %v47 = vld [vmem:[#allocation2 + $0x20] sm:$0xf]
    %v48 = vld [vmem:[#allocation2 + $0x24] sm:$0xf]
    %v49 = vld [vmem:[#allocation2 + $0x28] sm:$0xf]
    %v50 = vld [vmem:[#allocation2 + $0x2c] sm:$0xf]
    %v51 = vld [vmem:[#allocation2 + $0x30] sm:$0xf]
    %v52 = vld [vmem:[#allocation2 + $0x34] sm:$0xf]
    %v53 = vld [vmem:[#allocation2 + $0x38] sm:$0xf]
    %v54 = vld [vmem:[#allocation2 + $0x3c] sm:$0xf]
    %v57 = vunpack.c.l.b16 %v37
    %v58 = vunpack.c.l.b16 %v38
    %v59 = vpack.c.b16 %v58, %v57
    %v77 = vunpack.c.l.b16 %v39
    %v78 = vunpack.c.l.b16 %v40
    %v79 = vunpack.c.l.b16 %v41
    %v80 = vunpack.c.l.b16 %v42
    %v81 = vunpack.c.l.b16 %v43
    %v82 = vunpack.c.l.b16 %v44
    %v83 = vunpack.c.l.b16 %v45
    %v84 = vunpack.c.l.b16 %v46
    %v85 = vunpack.c.l.b16 %v47
    %v86 = vunpack.c.l.b16 %v48
    %v87 = vunpack.c.l.b16 %v49
    %v88 = vunpack.c.l.b16 %v50
    %v89 = vunpack.c.l.b16 %v51
    %v90 = vunpack.c.l.b16 %v52
    %v91 = vunpack.c.l.b16 %v53
    %v92 = vunpack.c.l.b16 %v54
    %v93 = vpack.c.b16 %v78, %v77
    %v94 = vpack.c.b16 %v80, %v79
    %v95 = vpack.c.b16 %v82, %v81
    %v96 = vpack.c.b16 %v84, %v83
    %v97 = vpack.c.b16 %v86, %v85
    %v98 = vpack.c.b16 %v88, %v87
    %v99 = vpack.c.b16 %v90, %v89
    %v100 = vpack.c.b16 %v92, %v91
    %109 = vmatprep.subr.bf16.mxu0 0
    %110 = vmatpush1.bf16.msra.mxu0 %v100
    %111 = vmatprep.subr.bf16.mxu0 0
    %112 = vmatpush1.bf16.msra.mxu0 %v99
    %113 = vmatprep.subr.bf16.mxu0 0
    %114 = vmatpush1.bf16.msra.mxu0 %v98
    %115 = vmatprep.subr.bf16.mxu0 0
    %116 = vmatpush1.bf16.msra.mxu0 %v97
    %117 = vmatprep.subr.bf16.mxu0 0
    %118 = vmatpush1.bf16.msra.mxu0 %v96
    %119 = vmatprep.subr.bf16.mxu0 0
    %120 = vmatpush1.bf16.msra.mxu0 %v95
    %121 = vmatprep.subr.bf16.mxu0 0
    %122 = vmatpush1.bf16.msra.mxu0 %v94
    %123 = vmatprep.subr.bf16.mxu0 0
    %124 = vmatpush1.bf16.msra.mxu0 %v93
    %125 = vmatprep.subr.bf16.mxu0 0
    %126 = vmatpush2.bf16.msra.mxu0 0
    %127 = vmatprep.subr.bf16.mxu0 0
    %128 = vmatpush2.bf16.msra.mxu0 0
    %129 = vmatprep.subr.bf16.mxu0 0
    %130 = vmatpush2.bf16.msra.mxu0 0
    %131 = vmatprep.subr.bf16.mxu0 0
    %132 = vmatpush2.bf16.msra.mxu0 0
    %133 = vmatprep.subr.bf16.mxu0 0
    %134 = vmatpush2.bf16.msra.mxu0 0
    %135 = vmatprep.subr.bf16.mxu0 0
    %136 = vmatpush2.bf16.msra.mxu0 0
    %137 = vmatprep.subr.bf16.mxu0 0
    %138 = vmatpush2.bf16.msra.mxu0 0
    %139 = vmatprep.subr.bf16.mxu0 0
    %140 = vmatpush2.bf16.msra.mxu0 0
    %141 = vmatprep.mubr.bf16.mxu0 0
    %142 = vmatmul.mubr.bf16.gmra.mxu0 %v59
    %v143 = vpop.f32.mrf.mxu0
    %v144 = vadd.f32 0.0, %v143
    %v145 = vpop.f32.mrf.mxu0
    %v146 = vpop.f32.mrf.mxu0
    %v147 = vadd.f32 0.0, %v146
    %v148 = vpop.f32.mrf.mxu0
    %149 = vdwg.mxu0
    %v150 = vadd.f32 %v35, %v144
    %v151 = vadd.f32 %v36, %v147
    %152 = vst [vmem:[%s3] sm:$0xff] %v150
    %153 = vst [vmem:[%s3 + $0x8] sm:$0xff] %v151
    // Predicated region
    $region22: #{_forward_impl.1} parent=1 // pred_check
      %p154 = pneg %p29
    $region23: #{_forward_impl.1} parent=1 // pred_check_branch
      %156 = sbr.rel (%p154) target = $region25
    $region24: #{_forward_impl.1} parent=1 // pred_region
      %v157 = vld [vmem:[%s3] sm:$0xff]
      %v158 = vld [vmem:[%s3 + $0x8] sm:$0xff]
      %v159 = vld [vmem:[%s2] sm:$0x1]
      %v161 = vlaneseq
      %v162 = vshrl.u32 %v161, 7
      %v163 = vsub.s32 0, %v162
      %v164 = vrot.slane %v159, %v163
      %v166 = vadd.f32 %v157, %v164
      %v167 = vadd.f32 %v158, %v164
      %168 = vst [vmem:[%s3] sm:$0xff] %v166
      %169 = vst [vmem:[%s3 + $0x8] sm:$0xff] %v167
    $region25: #{_forward_impl.1} parent=1 // pred_fallthru
      _
    // Predicated region
    $region26: #{_forward_impl.1} parent=1 // pred_check
      _
    $region27: #{_forward_impl.1} parent=1 // pred_check_branch
      %171 = sbr.rel (0) target = $region29
    $region28: #{_forward_impl.1} parent=1 // pred_region
      _
    $region29: #{_forward_impl.1} parent=1 // pred_fallthru
      _
    // Predicated region
    $region30: #{_forward_impl.1} parent=1 // pred_check
      _
    $region31: #{_forward_impl.1} parent=1 // pred_check_branch
      %173 = sbr.rel (0) target = $region33
    $region32: #{_forward_impl.1} parent=1 // pred_region
      _
    $region33: #{_forward_impl.1} parent=1 // pred_fallthru
      _
    %174 = vsyncpa [#allocation3], 1

</llo_original>
